<compile_context>
chip_gen: v7x
topology: tpu7x:2x2x1
jax: 0.10.0
libtpu: 0.0.40
codegen_flags: <defaults>
</compile_context>

<pallas_src>
import functools

import jax
import jax.numpy as jnp
from jax.experimental import pallas as pl
from jax.experimental.pallas import tpu as pltpu


def _relu_kernel(x_ref, o_ref):
    o_ref[...] = jnp.maximum(x_ref[...], 0).astype(o_ref.dtype)


def _hw_block_params():
    """Pick (max_block_bytes, vmem_limit_bytes) per TPU generation."""
    try:
        info = pltpu.get_tpu_info()
        vmem = int(getattr(info, "vmem_capacity_bytes", 0) or 0)
    except Exception:
        vmem = 0
    if 0 < vmem <= 96 * 1024 * 1024:
        # v7x-class: 64 MiB VMEM but ~3.2 TB/s HBM -> larger blocks amortize
        # the per-grid-step overhead; 2 ops x 2 buffers x 8 MiB = 32 MiB.
        return 8 * 1024 * 1024, 40 * 1024 * 1024
    # v5e / v6e (128 MiB VMEM, slower HBM): 4 MiB blocks already sit at the
    # ~86% roofline plateau; 32 MiB scoped limit covers 2 x 2 x 4 MiB.
    return 4 * 1024 * 1024, 32 * 1024 * 1024


# Below this total size the pallas_call setup cost exceeds the DMA time.
_SMALL_BYPASS_BYTES = 256 * 1024
# Above this total size we force >= 2 grid steps (v7x megacore sharding).
_MEGACORE_SPLIT_BYTES = 2 * 1024 * 1024


def simple_relu(x, *, max_block_bytes=None, vmem_limit_bytes=None,
                force_pallas=False):
    """Elementwise ReLU via Pallas. Works for any shape/dtype."""
    orig_shape = x.shape
    dtype = x.dtype
    n = x.size
    if n == 0:
        return x

    itemsize = jnp.dtype(dtype).itemsize
    total_bytes = n * itemsize

    # Small-input bypass (review item: tiny activations).
    if not force_pallas and total_bytes < _SMALL_BYPASS_BYTES:
        return jnp.maximum(x, 0).astype(dtype)

    hw_block, hw_vmem = _hw_block_params()
    if max_block_bytes is None:
        max_block_bytes = hw_block
    if vmem_limit_bytes is None:
        vmem_limit_bytes = hw_vmem

    # Dtype-aware sublane packing (rows per packed vreg tile).
    sub = {1: 32, 2: 16}.get(itemsize, 8)

    flat = x.reshape(-1)

    compiler_params = pltpu.CompilerParams(
        dimension_semantics=("parallel",),
        vmem_limit_bytes=vmem_limit_bytes,
    )

    # ---- Fast path: n divisible by 128 -> lane-dense 2D slab, no padding ----
    lane = None
    for cand in (1024, 512, 256, 128):
        if n % cand == 0:
            lane = cand
            break

    if lane is not None:
        rows = n // lane
        x2d = flat.reshape(rows, lane)

        tile_rows = max(sub, (max_block_bytes // (lane * itemsize)) // sub * sub)
        if total_bytes > _MEGACORE_SPLIT_BYTES:
            # Guarantee >= 2 grid steps so v7x's 2 TensorCores both get work.
            half = pl.cdiv(pl.cdiv(rows, 2), sub) * sub
            tile_rows = min(tile_rows, half)

        if tile_rows >= rows:
            # Single block == full array dims (exempt from the 8-row rule).
            tile_rows = rows
            grid = (1,)
        else:
            grid = (pl.cdiv(rows, tile_rows),)

        out2d = pl.pallas_call(
            _relu_kernel,
            out_shape=jax.ShapeDtypeStruct((rows, lane), dtype),
            grid_spec=pltpu.PrefetchScalarGridSpec(
                num_scalar_prefetch=0,
                grid=grid,
                in_specs=[pl.BlockSpec((tile_rows, lane), lambda i: (i, 0))],
                out_specs=pl.BlockSpec((tile_rows, lane), lambda i: (i, 0)),
            ),
            compiler_params=compiler_params,
        )(x2d)
        return out2d.reshape(orig_shape)

    # ---- Ragged path: run directly on the flat 1-D array ----
    # Pallas masks the partial edge block, so there is no jnp.pad and no tail
    # slice -> no extra full-array HBM passes.
    block_quantum = sub * 128  # one packed (sublane, lane) tile of elements
    block_elems = max(
        block_quantum,
        (max_block_bytes // itemsize) // block_quantum * block_quantum,
    )
    if total_bytes > _MEGACORE_SPLIT_BYTES:
        half = pl.cdiv(pl.cdiv(n, 2), block_quantum) * block_quantum
        block_elems = min(block_elems, half)

    if block_elems >= n:
        block_elems = n  # single full-array block (exempt from 128 rule)
        grid = (1,)
    else:
        grid = (pl.cdiv(n, block_elems),)

    out1d = pl.pallas_call(
        _relu_kernel,
        out_shape=jax.ShapeDtypeStruct((n,), dtype),
        grid_spec=pltpu.PrefetchScalarGridSpec(
            num_scalar_prefetch=0,
            grid=grid,
            in_specs=[pl.BlockSpec((block_elems,), lambda i: (i,))],
            out_specs=pl.BlockSpec((block_elems,), lambda i: (i,)),
        ),
        compiler_params=compiler_params,
    )(flat)
    return out1d.reshape(orig_shape)


if __name__ == "__main__":
    key = jax.random.PRNGKey(0)
    k1, k2, k3, k4 = jax.random.split(key, 4)

    # Jitted entry point (static config args -> one compile per config).
    relu = jax.jit(
        simple_relu,
        static_argnames=("max_block_bytes", "vmem_limit_bytes", "force_pallas"),
    )

    # 1) Main demo: NCHW conv-style activation (fast 2D path, single block).
    x = jax.random.normal(k1, (2, 4, 16, 16), dtype=jnp.float32)
    y = jax.block_until_ready(relu(x, force_pallas=True))
    assert y.shape == x.shape and y.dtype == x.dtype
    assert jnp.array_equal(y, jnp.maximum(x, 0.0))

    # 2) Fast 2D path with a multi-step pipelined grid (forced small blocks).
    x2 = jax.random.normal(k2, (4, 8, 32, 32), dtype=jnp.float32)
    y2 = jax.block_until_ready(
        relu(x2, force_pallas=True, max_block_bytes=32 * 1024))
    assert jnp.array_equal(y2, jnp.maximum(x2, 0.0))

    # 3) Ragged element count (n % 128 != 0), single full-array 1D block.
    x3 = jax.random.normal(k3, (8, 125), dtype=jnp.float32)
    y3 = jax.block_until_ready(relu(x3, force_pallas=True))
    assert jnp.array_equal(y3, jnp.maximum(x3, 0.0))

    # 4) Ragged, multi-block 1D path with a masked partial edge block.
    x4 = jax.random.normal(k4, (40, 125), dtype=jnp.float32)
    y4 = jax.block_until_ready(
        relu(x4, force_pallas=True, max_block_bytes=4 * 1024))
    assert jnp.array_equal(y4, jnp.maximum(x4, 0.0))

    print("KERNEL_OK")
</pallas_src>

<mosaic_0001>
module attributes {stable_mosaic.version = 11 : i64} {
  func.func @_relu_kernel(%arg0: i32, %arg1: memref<2x1024xf32, #tpu.memory_space<vmem>>, %arg2: memref<2x1024xf32, #tpu.memory_space<vmem>>) attributes {dimension_semantics = [#tpu.dimension_semantics<parallel>], iteration_bounds = array<i64: 1>, scalar_prefetch = 0 : i64, scratch_operands = 0 : i64, tpu.core_type = #tpu.core_type<tc>, window_params = [{transform_indices = @transform_0, window_bounds = array<i64: 2, 1024>}, {transform_indices = @transform_1, window_bounds = array<i64: 2, 1024>}]} {
    %c0 = arith.constant 0 : index
    %c0_0 = arith.constant 0 : index
    %0 = vector.load %arg1[%c0, %c0_0] : memref<2x1024xf32, #tpu.memory_space<vmem>>, vector<2x1024xf32>
    %cst = arith.constant 0.000000e+00 : f32
    %1 = vector.broadcast %cst : f32 to vector<2x1024xf32>
    %2 = arith.maximumf %0, %1 : vector<2x1024xf32>
    %c0_1 = arith.constant 0 : index
    %c0_2 = arith.constant 0 : index
    %3 = vector.load %arg2[%c0_1, %c0_2] : memref<2x1024xf32, #tpu.memory_space<vmem>>, vector<2x1024xf32>
    tpu.vector_store %arg2[%c0_1, %c0_2], %2 {strides = array<i32>} : memref<2x1024xf32, #tpu.memory_space<vmem>>, vector<2x1024xf32>,
    return
  }
  func.func @transform_0(%arg0: i32) -> (i32, i32) {
    %c0_i32 = arith.constant 0 : i32
    %c0_i32_0 = arith.constant 0 : i32
    return %arg0, %c0_i32 : i32, i32
  }
  func.func @transform_1(%arg0: i32) -> (i32, i32) {
    %c0_i32 = arith.constant 0 : i32
    %c0_i32_0 = arith.constant 0 : i32
    return %arg0, %c0_i32 : i32, i32
  }
}

</mosaic_0001>

<llo_original>
// kernel: simple_relu.1
$region0: #{simple_relu.1}
  #allocation0 [shape = 'u32[]', space=smem, size = 0x4, offset = 0x4, fixed_abs, tag = 'smem constant byte address 0x4 - core index']
  #allocation1 [shape = 'u32[144,128]{1,0:T(1,128)}', space=vmem, size = 0x12000, scoped, tag = 'internal scratch']
  %s0 = inlined_call_operand.vmem [shape: f32[2,1024], index: 0, kind: input, shape index: {}]
  %s1 = inlined_call_operand.vmem [shape: f32[2,1024], index: 1, kind: output, shape index: {}]
  %s2 = sld [smem:[#allocation0]]
  $region14: #{simple_relu.1} parent=0
    _
  %s4 = ssub.s32 1, %s2
  %s5 = scalar_select 0, %s4, %s2
  // Predicated region
  $region2: #{simple_relu.1} parent=0 // pred_check
    _
  $region3: #{simple_relu.1} parent=0 // pred_check_branch
    %7 = sbr.rel (0) target = $region5
  $region4: #{simple_relu.1} parent=0 // pred_region
    _
  $region5: #{simple_relu.1} parent=0 // pred_fallthru
    _
  %v8 = vld [vmem:[%s0] sm:$0xff]
  %v9 = vld [vmem:[%s0 + $0x8] sm:$0xff]
  %v10 = vmax.f32 %v8, 0.0
  %v11 = vmax.f32 %v9, 0.0
  %12 = vst [vmem:[%s1] sm:$0xff] %v10
  %13 = vst [vmem:[%s1 + $0x8] sm:$0xff] %v11
  // Predicated region
  $region6: #{simple_relu.1} parent=0 // pred_check
    _
  $region7: #{simple_relu.1} parent=0 // pred_check_branch
    %15 = sbr.rel (0) target = $region9
  $region8: #{simple_relu.1} parent=0 // pred_region
    _
  $region9: #{simple_relu.1} parent=0 // pred_fallthru
    _
  // Predicated region
  $region10: #{simple_relu.1} parent=0 // pred_check
    _
  $region11: #{simple_relu.1} parent=0 // pred_check_branch
    %17 = sbr.rel (0) target = $region13
  $region12: #{simple_relu.1} parent=0 // pred_region
    _
  $region13: #{simple_relu.1} parent=0 // pred_fallthru
    _

</llo_original>
